<compile_context>
chip_gen: v7x
topology: tpu7x:2x2x1
jax: 0.10.0
libtpu: 0.0.40
codegen_flags: <defaults>
</compile_context>

<pallas_src>
import functools

import jax
import jax.numpy as jnp
from jax import lax
from jax.experimental import pallas as pl
from jax.experimental.pallas import tpu as pltpu


def _in_trust_kernel(logits_ref, labels_ref, w_ref, out_ref,
                     acc_ce_ref, acc_dce_ref, acc_w_ref,
                     *, delta, n_rows):
    p = pl.program_id(0)           # parallel slice
    i = pl.program_id(1)           # reduction step within the slice
    n_i = pl.num_programs(1)

    c, tn = logits_ref.shape       # (C, TN): classes on sublanes, tokens on lanes
    col0 = (p * n_i + i) * tn      # global token index of lane 0 of this tile

    # Zero the per-slice lane accumulators at the start of each slice's sweep.
    @pl.when(i == 0)
    def _():
        acc_ce_ref[...] = jnp.zeros_like(acc_ce_ref)
        acc_dce_ref[...] = jnp.zeros_like(acc_dce_ref)
        acc_w_ref[...] = jnp.zeros_like(acc_w_ref)

    # Heavy body: skipped entirely for fully-out-of-range clamped overflow
    # steps (their index_map was clamped to the last real block).
    @pl.when(col0 < n_rows)
    def _():
        logits = logits_ref[...].astype(jnp.float32)     # (C, TN) cast in-kernel
        labels = labels_ref[...]                         # (1, TN) int32
        w = w_ref[...].astype(jnp.float32)               # (1, TN)

        # Valid-token mask over the lane axis (ragged last tile).
        col_ids = col0 + lax.broadcasted_iota(jnp.int32, (1, tn), 1)
        valid = col_ids < n_rows                         # (1, TN) bool

        class_ids = lax.broadcasted_iota(jnp.int32, (c, tn), 0)
        is_label = class_ids == labels                   # (C, TN), sublane bcast

        # Numerically-stable softmax / log-softmax along the class (sublane) axis.
        m = jnp.max(logits, axis=0, keepdims=True)       # (1, TN)
        z = logits - m
        ez = jnp.exp(z)
        se = jnp.sum(ez, axis=0, keepdims=True)          # (1, TN)
        inv_se = 1.0 / se                                # exact; only (1, TN)
        log_se = jnp.log(se)

        # CE contribution: sum(nll * attention) == -sum(logp[label] * w).
        # logp[label] = z[label] - log(se); negation folded into the finalize.
        z_at_label = jnp.sum(jnp.where(is_label, z, 0.0), axis=0, keepdims=True)
        logp_at_label = z_at_label - log_se              # (1, TN)
        acc_ce_ref[...] += jnp.where(valid, logp_at_label * w, 0.0)

        # Attention-weight sum.
        acc_w_ref[...] += jnp.where(valid, w, 0.0)

        # DCE contribution (negation folded into the finalize).
        # onehot_c = clamp(one_hot, 1e-4, 1) folded into scalar constants.
        pred = jnp.clip(ez * inv_se, 1e-7, 1.0)          # (C, TN)
        mix = pred * delta + jnp.where(is_label,
                                       1.0 - delta, 1e-4 * (1.0 - delta))
        dce_row = jnp.sum(pred * jnp.log(mix), axis=0, keepdims=True)  # (1, TN)
        acc_dce_ref[...] += jnp.where(valid, dce_row, 0.0)

    # Final lane reduction + single lane-padded (8,128) store, once per slice.
    @pl.when(i == n_i - 1)
    def _():
        sum_nll_w = -jnp.sum(acc_ce_ref[...])
        sum_w = jnp.sum(acc_w_ref[...])
        sum_dce = -jnp.sum(acc_dce_ref[...])
        lane = lax.broadcasted_iota(jnp.int32, out_ref.shape, 2)
        vals = jnp.where(lane == 0, sum_nll_w,
               jnp.where(lane == 1, sum_w,
               jnp.where(lane == 2, sum_dce, 0.0)))
        out_ref[...] = vals


def in_trust_loss(logits, labels, label_attention,
                  alpha=1.0, beta=0.8, delta=0.5, num_classes=35,
                  row_tile=2048, num_slices=1, core_parallel=False):
    """logits: (B, S, C); labels: (B, S) int; label_attention: (B, S).

    num_slices / core_parallel: on v7x pass num_slices=2, core_parallel=True to
    split the token range over both TensorCores; leave defaults on v5e/v6e.
    """
    b, s, c = logits.shape
    assert c == num_classes
    n = b * s

    labels = jnp.where(labels == -100, 0, labels)

    # Class-on-sublane layout: classes on the sublane axis (35 -> 40 sublanes),
    # tokens on the 128-wide lane axis.  Logits stay in their native dtype on
    # the wire; labels/attention are delivered lane-dense as (1, n) rows.
    logits_t = jnp.transpose(logits.reshape(n, c))              # (C, n)
    labels_row = labels.reshape(1, n).astype(jnp.int32)         # (1, n)
    w_row = label_attention.reshape(1, n).astype(jnp.float32)   # (1, n)

    # Lane-axis tile: multiple of 128, or the full extent when n is small.
    if n <= row_tile:
        row_tile = n
    else:
        row_tile = max(128, (int(row_tile) // 128) * 128)

    n_tiles = pl.cdiv(n, row_tile)
    num_slices = max(1, min(int(num_slices), n_tiles))
    tps = pl.cdiv(n_tiles, num_slices)          # tiles per parallel slice

    # Block index along the token (lane) axis.  Overflow steps (only when
    # n_tiles % num_slices != 0) clamp to the last real block; those steps are
    # skipped in-kernel, so the data content is irrelevant.
    def col_block(pr, it):
        return (0, jnp.minimum(pr * tps + it, n_tiles - 1))

    kernel = functools.partial(_in_trust_kernel, delta=float(delta), n_rows=n)

    sem0 = pltpu.CORE_PARALLEL if core_parallel else pltpu.PARALLEL

    out = pl.pallas_call(
        kernel,
        out_shape=jax.ShapeDtypeStruct((num_slices, 8, 128), jnp.float32),
        grid_spec=pltpu.PrefetchScalarGridSpec(
            num_scalar_prefetch=0,
            grid=(num_slices, tps),
            in_specs=[
                pl.BlockSpec((c, row_tile), col_block),     # logits (C, n)
                pl.BlockSpec((1, row_tile), col_block),     # labels (1, n)
                pl.BlockSpec((1, row_tile), col_block),     # attention (1, n)
            ],
            out_specs=pl.BlockSpec((1, 8, 128), lambda pr, it: (pr, 0, 0)),
            scratch_shapes=[
                pltpu.VMEM((1, row_tile), jnp.float32),     # CE lane accumulator
                pltpu.VMEM((1, row_tile), jnp.float32),     # DCE lane accumulator
                pltpu.VMEM((1, row_tile), jnp.float32),     # attention-sum acc
            ],
        ),
        compiler_params=pltpu.CompilerParams(
            dimension_semantics=(sem0, pltpu.ARBITRARY)),
    )(logits_t, labels_row, w_row)

    sum_nll_w = jnp.sum(out[:, 0, 0])
    sum_w = jnp.sum(out[:, 0, 1])
    sum_dce = jnp.sum(out[:, 0, 2])

    ce = sum_nll_w / (sum_w + 1e-13)       # average='token'
    dce_mean = sum_dce / float(n)          # torch mean over all B*S tokens
    return alpha * ce - beta * dce_mean


def _reference_loss(logits, labels, label_attention,
                    alpha=1.0, beta=0.8, delta=0.5, num_classes=35):
    """Pure-JAX reference mirroring the PyTorch forward."""
    labels = jnp.where(labels == -100, 0, labels)
    logp = jax.nn.log_softmax(logits.astype(jnp.float32), axis=-1)
    nll = -jnp.take_along_axis(logp, labels[..., None], axis=-1)[..., 0]
    w = label_attention.astype(jnp.float32)
    ce = jnp.sum(nll * w) / (jnp.sum(w) + 1e-13)

    active_logits = logits.reshape(-1, num_classes).astype(jnp.float32)
    active_labels = labels.reshape(-1)
    pred = jax.nn.softmax(active_logits, axis=1)
    pred = jnp.clip(pred, 1e-7, 1.0)
    oh = jax.nn.one_hot(active_labels, num_classes, dtype=jnp.float32)
    oh = jnp.clip(oh, 1e-4, 1.0)
    dce = -jnp.sum(pred * jnp.log(pred * delta + oh * (1.0 - delta)), axis=1)
    return alpha * ce - beta * jnp.mean(dce)


def _make_batch(key, b, s, c, dtype):
    k1, k2, k3, k4 = jax.random.split(key, 4)
    logits = jax.random.normal(k1, (b, s, c), dtype=jnp.float32).astype(dtype)
    labels = jax.random.randint(k2, (b, s), 0, c, dtype=jnp.int32)
    ignore = jax.random.bernoulli(k3, 0.2, (b, s))
    labels = jnp.where(ignore, -100, labels)
    attn = jax.random.bernoulli(k4, 0.8, (b, s)).astype(jnp.float32)
    return logits, labels, attn


if __name__ == "__main__":
    C = 35
    key = jax.random.PRNGKey(0)
    k_small, k_big = jax.random.split(key)

    # 1) Small deterministic f32 example (single full-extent block, n < 128).
    B, S = 2, 8
    logits, labels, attn = _make_batch(k_small, B, S, C, jnp.float32)
    loss = in_trust_loss(logits, labels, attn,
                         alpha=1.0, beta=0.8, delta=0.5, num_classes=C)
    loss = jax.block_until_ready(loss)
    ref = jax.block_until_ready(_reference_loss(logits, labels, attn,
                                                alpha=1.0, beta=0.8,
                                                delta=0.5, num_classes=C))
    assert jnp.allclose(loss, ref, rtol=1e-5, atol=1e-5), (loss, ref)

    # 2) Larger bf16 batch: multi-tile with a ragged last tile (2400 = 2048+352).
    B2, S2 = 4, 600
    logits2, labels2, attn2 = _make_batch(k_big, B2, S2, C, jnp.bfloat16)
    loss2 = in_trust_loss(logits2, labels2, attn2,
                          alpha=1.0, beta=0.8, delta=0.5, num_classes=C)
    loss2 = jax.block_until_ready(loss2)
    ref2 = jax.block_until_ready(_reference_loss(logits2, labels2, attn2,
                                                 alpha=1.0, beta=0.8,
                                                 delta=0.5, num_classes=C))
    assert jnp.allclose(loss2, ref2, rtol=1e-4, atol=1e-4), (loss2, ref2)

    # 3) Same batch through the two-slice path with a small tile so the
    #    clamped-overflow / skipped-step logic is exercised (5 tiles, 2 slices).
    # TODO(synk): on v7x also pass core_parallel=True to land the slices on
    # both TensorCores (pltpu.CORE_PARALLEL); left off here for portability.
    loss3 = in_trust_loss(logits2, labels2, attn2,
                          alpha=1.0, beta=0.8, delta=0.5, num_classes=C,
                          row_tile=512, num_slices=2)
    loss3 = jax.block_until_ready(loss3)
    assert jnp.allclose(loss3, ref2, rtol=1e-4, atol=1e-4), (loss3, ref2)

    print("KERNEL_OK")
</pallas_src>

<mosaic_0001>
module attributes {stable_mosaic.version = 11 : i64} {
  func.func @_in_trust_kernel(%arg0: i32, %arg1: i32, %arg2: memref<35x16xf32, #tpu.memory_space<vmem>>, %arg3: memref<1x16xi32, #tpu.memory_space<vmem>>, %arg4: memref<1x16xf32, #tpu.memory_space<vmem>>, %arg5: memref<1x8x128xf32, #tpu.memory_space<vmem>>, %arg6: memref<1x16xf32, #tpu.memory_space<vmem>>, %arg7: memref<1x16xf32, #tpu.memory_space<vmem>>, %arg8: memref<1x16xf32, #tpu.memory_space<vmem>>) attributes {dimension_semantics = [#tpu.dimension_semantics<parallel>, #tpu.dimension_semantics<arbitrary>], iteration_bounds = array<i64: 1, 1>, scalar_prefetch = 0 : i64, scratch_operands = 3 : i64, tpu.core_type = #tpu.core_type<tc>, window_params = [{transform_indices = @transform_0, window_bounds = array<i64: 35, 16>}, {transform_indices = @transform_1, window_bounds = array<i64: 1, 16>}, {transform_indices = @transform_2, window_bounds = array<i64: 1, 16>}, {transform_indices = @transform_3, window_bounds = array<i64: 1, 8, 128>}]} {
    %c1_i32 = arith.constant 1 : i32
    %0 = arith.muli %arg0, %c1_i32 : i32
    %1 = arith.addi %0, %arg1 : i32
    %c16_i32 = arith.constant 16 : i32
    %2 = arith.muli %1, %c16_i32 : i32
    %c0_i32 = arith.constant 0 : i32
    %3 = arith.cmpi eq, %arg1, %c0_i32 : i32
    %4 = arith.extui %3 : i1 to i32
    %c0_i32_0 = arith.constant 0 : i32
    %5 = arith.cmpi ne, %4, %c0_i32_0 : i32
    scf.if %5 {
      %cst = arith.constant 0.000000e+00 : f32
      %12 = vector.broadcast %cst : f32 to vector<1x16xf32>
      %c0 = arith.constant 0 : index
      %c0_5 = arith.constant 0 : index
      %13 = vector.load %arg6[%c0, %c0_5] : memref<1x16xf32, #tpu.memory_space<vmem>>, vector<1x16xf32>
      tpu.vector_store %arg6[%c0, %c0_5], %12 {strides = array<i32>} : memref<1x16xf32, #tpu.memory_space<vmem>>, vector<1x16xf32>,
      %cst_6 = arith.constant 0.000000e+00 : f32
      %14 = vector.broadcast %cst_6 : f32 to vector<1x16xf32>
      %c0_7 = arith.constant 0 : index
      %c0_8 = arith.constant 0 : index
      %15 = vector.load %arg7[%c0_7, %c0_8] : memref<1x16xf32, #tpu.memory_space<vmem>>, vector<1x16xf32>
      tpu.vector_store %arg7[%c0_7, %c0_8], %14 {strides = array<i32>} : memref<1x16xf32, #tpu.memory_space<vmem>>, vector<1x16xf32>,
      %cst_9 = arith.constant 0.000000e+00 : f32
      %16 = vector.broadcast %cst_9 : f32 to vector<1x16xf32>
      %c0_10 = arith.constant 0 : index
      %c0_11 = arith.constant 0 : index
      %17 = vector.load %arg8[%c0_10, %c0_11] : memref<1x16xf32, #tpu.memory_space<vmem>>, vector<1x16xf32>
      tpu.vector_store %arg8[%c0_10, %c0_11], %16 {strides = array<i32>} : memref<1x16xf32, #tpu.memory_space<vmem>>, vector<1x16xf32>,
    } else {
    }
    %c16_i32_1 = arith.constant 16 : i32
    %6 = arith.cmpi slt, %2, %c16_i32_1 : i32
    %7 = arith.extui %6 : i1 to i32
    %c0_i32_2 = arith.constant 0 : i32
    %8 = arith.cmpi ne, %7, %c0_i32_2 : i32
    scf.if %8 {
      %c0 = arith.constant 0 : index
      %c0_5 = arith.constant 0 : index
      %12 = vector.load %arg2[%c0, %c0_5] : memref<35x16xf32, #tpu.memory_space<vmem>>, vector<35x16xf32>
      %c0_6 = arith.constant 0 : index
      %c0_7 = arith.constant 0 : index
      %13 = vector.load %arg3[%c0_6, %c0_7] : memref<1x16xi32, #tpu.memory_space<vmem>>, vector<1x16xi32>
      %c0_8 = arith.constant 0 : index
      %c0_9 = arith.constant 0 : index
      %14 = vector.load %arg4[%c0_8, %c0_9] : memref<1x16xf32, #tpu.memory_space<vmem>>, vector<1x16xf32>
      %15 = tpu.iota {dimensions = array<i32: 1>} : vector<1x16xi32>
      %16 = vector.broadcast %2 : i32 to vector<1x16xi32>
      %17 = arith.addi %16, %15 : vector<1x16xi32>
      %c16_i32_10 = arith.constant 16 : i32
      %18 = vector.broadcast %c16_i32_10 : i32 to vector<1x16xi32>
      %19 = arith.cmpi slt, %17, %18 : vector<1x16xi32>
      %20 = tpu.iota {dimensions = array<i32: 0>} : vector<35x16xi32>
      %21 = vector.broadcast %13 : vector<1x16xi32> to vector<35x16xi32>
      %22 = arith.cmpi eq, %20, %21 : vector<35x16xi32>
      %cst = arith.constant dense<0xFF800000> : vector<16xf32>
      %23 = vector.multi_reduction <maximumf>, %12, %cst [0] : vector<35x16xf32> to vector<16xf32>
      %24 = vector.shape_cast %23 : vector<16xf32> to vector<1x16xf32>
      %25 = vector.broadcast %24 : vector<1x16xf32> to vector<35x16xf32>
      %26 = arith.subf %12, %25 : vector<35x16xf32>
      %27 = math.exp %26 : vector<35x16xf32>
      %cst_11 = arith.constant dense<0.000000e+00> : vector<16xf32>
      %28 = vector.multi_reduction <add>, %27, %cst_11 [0] : vector<35x16xf32> to vector<16xf32>
      %29 = vector.shape_cast %28 : vector<16xf32> to vector<1x16xf32>
      %cst_12 = arith.constant 1.000000e+00 : f32
      %30 = vector.broadcast %cst_12 : f32 to vector<1x16xf32>
      %31 = arith.divf %30, %29 : vector<1x16xf32>
      %32 = math.log %29 : vector<1x16xf32>
      %cst_13 = arith.constant 0.000000e+00 : f32
      %33 = vector.broadcast %cst_13 : f32 to vector<35x16xf32>
      %34 = arith.select %22, %26, %33 : vector<35x16xi1>, vector<35x16xf32>
      %cst_14 = arith.constant dense<0.000000e+00> : vector<16xf32>
      %35 = vector.multi_reduction <add>, %34, %cst_14 [0] : vector<35x16xf32> to vector<16xf32>
      %36 = vector.shape_cast %35 : vector<16xf32> to vector<1x16xf32>
      %37 = arith.subf %36, %32 : vector<1x16xf32>
      %c0_15 = arith.constant 0 : index
      %c0_16 = arith.constant 0 : index
      %38 = vector.load %arg6[%c0_15, %c0_16] : memref<1x16xf32, #tpu.memory_space<vmem>>, vector<1x16xf32>
      %39 = arith.mulf %37, %14 : vector<1x16xf32>
      %cst_17 = arith.constant 0.000000e+00 : f32
      %40 = vector.broadcast %cst_17 : f32 to vector<1x16xf32>
      %41 = arith.select %19, %39, %40 : vector<1x16xi1>, vector<1x16xf32>
      %42 = arith.addf %38, %41 : vector<1x16xf32>
      %c0_18 = arith.constant 0 : index
      %c0_19 = arith.constant 0 : index
      %43 = vector.load %arg6[%c0_18, %c0_19] : memref<1x16xf32, #tpu.memory_space<vmem>>, vector<1x16xf32>
      tpu.vector_store %arg6[%c0_18, %c0_19], %42 {strides = array<i32>} : memref<1x16xf32, #tpu.memory_space<vmem>>, vector<1x16xf32>,
      %c0_20 = arith.constant 0 : index
      %c0_21 = arith.constant 0 : index
      %44 = vector.load %arg8[%c0_20, %c0_21] : memref<1x16xf32, #tpu.memory_space<vmem>>, vector<1x16xf32>
      %cst_22 = arith.constant 0.000000e+00 : f32
      %45 = vector.broadcast %cst_22 : f32 to vector<1x16xf32>
      %46 = arith.select %19, %14, %45 : vector<1x16xi1>, vector<1x16xf32>
      %47 = arith.addf %44, %46 : vector<1x16xf32>
      %c0_23 = arith.constant 0 : index
      %c0_24 = arith.constant 0 : index
      %48 = vector.load %arg8[%c0_23, %c0_24] : memref<1x16xf32, #tpu.memory_space<vmem>>, vector<1x16xf32>
      tpu.vector_store %arg8[%c0_23, %c0_24], %47 {strides = array<i32>} : memref<1x16xf32, #tpu.memory_space<vmem>>, vector<1x16xf32>,
      %49 = vector.broadcast %31 : vector<1x16xf32> to vector<35x16xf32>
      %50 = arith.mulf %27, %49 : vector<35x16xf32>
      %cst_25 = arith.constant 1.000000e-07 : f32
      %cst_26 = arith.constant 1.000000e+00 : f32
      %51 = vector.broadcast %cst_25 : f32 to vector<35x16xf32>
      %52 = arith.maximumf %51, %50 : vector<35x16xf32>
      %53 = vector.broadcast %cst_26 : f32 to vector<35x16xf32>
      %54 = arith.minimumf %53, %52 : vector<35x16xf32>
      %cst_27 = arith.constant 5.000000e-01 : f32
      %55 = vector.broadcast %cst_27 : f32 to vector<35x16xf32>
      %56 = arith.mulf %54, %55 : vector<35x16xf32>
      %cst_28 = arith.constant 5.000000e-01 : f32
      %cst_29 = arith.constant 5.000000e-05 : f32
      %57 = vector.broadcast %cst_28 : f32 to vector<35x16xf32>
      %58 = vector.broadcast %cst_29 : f32 to vector<35x16xf32>
      %59 = arith.select %22, %57, %58 : vector<35x16xi1>, vector<35x16xf32>
      %60 = arith.addf %56, %59 : vector<35x16xf32>
      %61 = math.log %60 : vector<35x16xf32>
      %62 = arith.mulf %54, %61 : vector<35x16xf32>
      %cst_30 = arith.constant dense<0.000000e+00> : vector<16xf32>
      %63 = vector.multi_reduction <add>, %62, %cst_30 [0] : vector<35x16xf32> to vector<16xf32>
      %64 = vector.shape_cast %63 : vector<16xf32> to vector<1x16xf32>
      %c0_31 = arith.constant 0 : index
      %c0_32 = arith.constant 0 : index
      %65 = vector.load %arg7[%c0_31, %c0_32] : memref<1x16xf32, #tpu.memory_space<vmem>>, vector<1x16xf32>
      %cst_33 = arith.constant 0.000000e+00 : f32
      %66 = vector.broadcast %cst_33 : f32 to vector<1x16xf32>
      %67 = arith.select %19, %64, %66 : vector<1x16xi1>, vector<1x16xf32>
      %68 = arith.addf %65, %67 : vector<1x16xf32>
      %c0_34 = arith.constant 0 : index
      %c0_35 = arith.constant 0 : index
      %69 = vector.load %arg7[%c0_34, %c0_35] : memref<1x16xf32, #tpu.memory_space<vmem>>, vector<1x16xf32>
      tpu.vector_store %arg7[%c0_34, %c0_35], %68 {strides = array<i32>} : memref<1x16xf32, #tpu.memory_space<vmem>>, vector<1x16xf32>,
    } else {
    }
    %c0_i32_3 = arith.constant 0 : i32
    %9 = arith.cmpi eq, %arg1, %c0_i32_3 : i32
    %10 = arith.extui %9 : i1 to i32
    %c0_i32_4 = arith.constant 0 : i32
    %11 = arith.cmpi ne, %10, %c0_i32_4 : i32
    scf.if %11 {
      %c0 = arith.constant 0 : index
      %c0_5 = arith.constant 0 : index
      %12 = vector.load %arg6[%c0, %c0_5] : memref<1x16xf32, #tpu.memory_space<vmem>>, vector<1x16xf32>
      %13 = vector.shape_cast %12 : vector<1x16xf32> to vector<1x1x16xf32>
      %cst = arith.constant dense<0.000000e+00> : vector<1xf32>
      %14 = vector.multi_reduction <add>, %13, %cst [1, 2] : vector<1x1x16xf32> to vector<1xf32>
      %15 = vector.shape_cast %14 : vector<1xf32> to vector<1x1x1xf32>
      %16 = vector.extract %15[0, 0, 0] : f32 from vector<1x1x1xf32>
      %cst_6 = arith.constant 0.000000e+00 : f32
      %17 = arith.subf %cst_6, %16 : f32
      %c0_7 = arith.constant 0 : index
      %c0_8 = arith.constant 0 : index
      %18 = vector.load %arg8[%c0_7, %c0_8] : memref<1x16xf32, #tpu.memory_space<vmem>>, vector<1x16xf32>
      %19 = vector.shape_cast %18 : vector<1x16xf32> to vector<1x1x16xf32>
      %cst_9 = arith.constant dense<0.000000e+00> : vector<1xf32>
      %20 = vector.multi_reduction <add>, %19, %cst_9 [1, 2] : vector<1x1x16xf32> to vector<1xf32>
      %21 = vector.shape_cast %20 : vector<1xf32> to vector<1x1x1xf32>
      %22 = vector.extract %21[0, 0, 0] : f32 from vector<1x1x1xf32>
      %c0_10 = arith.constant 0 : index
      %c0_11 = arith.constant 0 : index
      %23 = vector.load %arg7[%c0_10, %c0_11] : memref<1x16xf32, #tpu.memory_space<vmem>>, vector<1x16xf32>
      %24 = vector.shape_cast %23 : vector<1x16xf32> to vector<1x1x16xf32>
      %cst_12 = arith.constant dense<0.000000e+00> : vector<1xf32>
      %25 = vector.multi_reduction <add>, %24, %cst_12 [1, 2] : vector<1x1x16xf32> to vector<1xf32>
      %26 = vector.shape_cast %25 : vector<1xf32> to vector<1x1x1xf32>
      %27 = vector.extract %26[0, 0, 0] : f32 from vector<1x1x1xf32>
      %cst_13 = arith.constant 0.000000e+00 : f32
      %28 = arith.subf %cst_13, %27 : f32
      %29 = tpu.iota {dimensions = array<i32: 2>} : vector<1x8x128xi32>
      %c0_i32_14 = arith.constant 0 : i32
      %30 = vector.broadcast %c0_i32_14 : i32 to vector<1x8x128xi32>
      %31 = arith.cmpi eq, %29, %30 : vector<1x8x128xi32>
      %c1_i32_15 = arith.constant 1 : i32
      %32 = vector.broadcast %c1_i32_15 : i32 to vector<1x8x128xi32>
      %33 = arith.cmpi eq, %29, %32 : vector<1x8x128xi32>
      %c2_i32 = arith.constant 2 : i32
      %34 = vector.broadcast %c2_i32 : i32 to vector<1x8x128xi32>
      %35 = arith.cmpi eq, %29, %34 : vector<1x8x128xi32>
      %cst_16 = arith.constant 0.000000e+00 : f32
      %36 = vector.broadcast %28 : f32 to vector<1x8x128xf32>
      %37 = vector.broadcast %cst_16 : f32 to vector<1x8x128xf32>
      %38 = arith.select %35, %36, %37 : vector<1x8x128xi1>, vector<1x8x128xf32>
      %39 = vector.broadcast %22 : f32 to vector<1x8x128xf32>
      %40 = arith.select %33, %39, %38 : vector<1x8x128xi1>, vector<1x8x128xf32>
      %41 = vector.broadcast %17 : f32 to vector<1x8x128xf32>
      %42 = arith.select %31, %41, %40 : vector<1x8x128xi1>, vector<1x8x128xf32>
      %c0_17 = arith.constant 0 : index
      %c0_18 = arith.constant 0 : index
      %c0_19 = arith.constant 0 : index
      %43 = vector.load %arg5[%c0_17, %c0_18, %c0_19] : memref<1x8x128xf32, #tpu.memory_space<vmem>>, vector<1x8x128xf32>
      tpu.vector_store %arg5[%c0_17, %c0_18, %c0_19], %42 {strides = array<i32>} : memref<1x8x128xf32, #tpu.memory_space<vmem>>, vector<1x8x128xf32>,
    } else {
    }
    return
  }
  func.func @transform_0(%arg0: i32, %arg1: i32) -> (i32, i32) {
    %c1_i32 = arith.constant 1 : i32
    %0 = arith.muli %arg0, %c1_i32 : i32
    %1 = arith.addi %0, %arg1 : i32
    %c0_i32 = arith.constant 0 : i32
    %2 = arith.minsi %1, %c0_i32 : i32
    %c0_i32_0 = arith.constant 0 : i32
    %c0_i32_1 = arith.constant 0 : i32
    return %c0_i32_0, %2 : i32, i32
  }
  func.func @transform_1(%arg0: i32, %arg1: i32) -> (i32, i32) {
    %c1_i32 = arith.constant 1 : i32
    %0 = arith.muli %arg0, %c1_i32 : i32
    %1 = arith.addi %0, %arg1 : i32
    %c0_i32 = arith.constant 0 : i32
    %2 = arith.minsi %1, %c0_i32 : i32
    %c0_i32_0 = arith.constant 0 : i32
    %c0_i32_1 = arith.constant 0 : i32
    return %c0_i32_0, %2 : i32, i32
  }
  func.func @transform_2(%arg0: i32, %arg1: i32) -> (i32, i32) {
    %c1_i32 = arith.constant 1 : i32
    %0 = arith.muli %arg0, %c1_i32 : i32
    %1 = arith.addi %0, %arg1 : i32
    %c0_i32 = arith.constant 0 : i32
    %2 = arith.minsi %1, %c0_i32 : i32
    %c0_i32_0 = arith.constant 0 : i32
    %c0_i32_1 = arith.constant 0 : i32
    return %c0_i32_0, %2 : i32, i32
  }
  func.func @transform_3(%arg0: i32, %arg1: i32) -> (i32, i32, i32) {
    %c0_i32 = arith.constant 0 : i32
    %c0_i32_0 = arith.constant 0 : i32
    %c0_i32_1 = arith.constant 0 : i32
    return %arg0, %c0_i32, %c0_i32_0 : i32, i32, i32
  }
}

</mosaic_0001>

<llo_original>
// kernel: tpu_custom_call.1
$region0: #{tpu_custom_call.1}
  #allocation0 [shape = 'u32[]', space=smem, size = 0x4, offset = 0x4, fixed_abs, tag = 'smem constant byte address 0x4 - core index']
  #allocation1 [shape = 'u32[144,128]{1,0:T(1,128)}', space=vmem, size = 0x12000, scoped, tag = 'internal scratch']
  #allocation2 [shape = 'f32[1,16]{1,0:T(1,128)}', space=vmem, size = 0x200, scoped, tag = 'scratch operand']
  #allocation3 [shape = 'f32[1,16]{1,0:T(1,128)}', space=vmem, size = 0x200, scoped, tag = 'scratch operand']
  #allocation4 [shape = 'f32[1,16]{1,0:T(1,128)}', space=vmem, size = 0x200, scoped, tag = 'scratch operand']
  %s0 = inlined_call_operand.vmem [shape: f32[35,16], index: 0, kind: input, shape index: {}]
  %s1 = inlined_call_operand.vmem [shape: s32[1,16], index: 1, kind: input, shape index: {}]
  %s2 = inlined_call_operand.vmem [shape: f32[1,16], index: 2, kind: input, shape index: {}]
  %s3 = inlined_call_operand.hbm [shape: f32[1,8,128], index: 3, kind: output, shape index: {}]
  %s4 = sld [smem:[#allocation0]]
  $region34: #{tpu_custom_call.1} parent=0
    _
  %s6 = ssub.s32 1, %s4
  %s7 = scalar_select 0, %s6, %s4
  $region1: #{tpu_custom_call.1} parent=0
    #allocation5 [shape = 'u8[4096]{0}', space=vmem, size = 0x1000, scoped, tag = 'output window, operand 0, single buffered']
    #allocation6 [shape = 's32[1]{0}', space=sflag, size = 0x4, scoped, tag = 'scoped memory for tpu_custom_call.1']
    %8 = vsyncpa [#allocation6], 0
    // Predicated region
    $region2: #{tpu_custom_call.1} parent=1 // pred_check
      _
    $region3: #{tpu_custom_call.1} parent=1 // pred_check_branch
      %10 = sbr.rel (0) target = $region5
    $region4: #{tpu_custom_call.1} parent=1 // pred_region
      %s11 = sadd.s32 0, 0
      %p12 = scmp.lt.s32.totalorder %s11, 0
      %s13 = scalar_select %p12, %s11, 0
      %p14 = scmp.lt.s32.totalorder %s13, 0
      %s15 = scalar_select %p14, %s13, 0
      %s16 = smul.addr %s15, 8
      %s17 = scalar_lea.vmem %s0, %s16
      %s18 = sadd.s32 0, 0
      %p19 = scmp.lt.s32.totalorder %s18, 0
      %s20 = scalar_select %p19, %s18, 0
    $region5: #{tpu_custom_call.1} parent=1 // pred_fallthru
      _
    // Predicated region
    $region6: #{tpu_custom_call.1} parent=1 // pred_check
      _
    $region7: #{tpu_custom_call.1} parent=1 // pred_check_branch
      %22 = sbr.rel (0) target = $region9
    $region8: #{tpu_custom_call.1} parent=1 // pred_region
      %s23 = sadd.s32 0, 0
      %p24 = scmp.lt.s32.totalorder %s23, 0
      %s25 = scalar_select %p24, %s23, 0
      %p26 = scmp.lt.s32.totalorder %s25, 0
      %s27 = scalar_select %p26, %s25, 0
      %s28 = scalar_lea.vmem %s1, %s27
      %s29 = sadd.s32 0, 0
      %p30 = scmp.lt.s32.totalorder %s29, 0
      %s31 = scalar_select %p30, %s29, 0
    $region9: #{tpu_custom_call.1} parent=1 // pred_fallthru
      _
    // Predicated region
    $region10: #{tpu_custom_call.1} parent=1 // pred_check
      _
    $region11: #{tpu_custom_call.1} parent=1 // pred_check_branch
      %33 = sbr.rel (0) target = $region13
    $region12: #{tpu_custom_call.1} parent=1 // pred_region
      %s34 = sadd.s32 0, 0
      %p35 = scmp.lt.s32.totalorder %s34, 0
      %s36 = scalar_select %p35, %s34, 0
      %p37 = scmp.lt.s32.totalorder %s36, 0
      %s38 = scalar_select %p37, %s36, 0
      %s39 = scalar_lea.vmem %s2, %s38
      %s40 = sadd.s32 0, 0
      %p41 = scmp.lt.s32.totalorder %s40, 0
      %s42 = scalar_select %p41, %s40, 0
    $region13: #{tpu_custom_call.1} parent=1 // pred_fallthru
      _
    %s43 = sadd.s32 0, 0
    %p44 = scmp.lt.s32.totalorder %s43, 0
    %s45 = scalar_select %p44, %s43, 0
    %p46 = scmp.lt.s32.totalorder %s45, 0
    %s47 = scalar_select %p46, %s45, 0
    %s48 = smul.addr %s47, 8
    %s49 = scalar_lea.vmem %s0, %s48
    %s50 = sadd.s32 0, 0
    %p51 = scmp.lt.s32.totalorder %s50, 0
    %s52 = scalar_select %p51, %s50, 0
    %p53 = scmp.lt.s32.totalorder %s52, 0
    %s54 = scalar_select %p53, %s52, 0
    %s55 = scalar_lea.vmem %s1, %s54
    %s56 = sadd.s32 0, 0
    %p57 = scmp.lt.s32.totalorder %s56, 0
    %s58 = scalar_select %p57, %s56, 0
    %p59 = scmp.lt.s32.totalorder %s58, 0
    %s60 = scalar_select %p59, %s58, 0
    %s61 = scalar_lea.vmem %s2, %s60
    %s62 = sadd.s32 0, 0
    %p63 = scmp.lt.s32.totalorder %s62, 0
    %s64 = scalar_select %p63, %s62, 0
    %p65 = scmp.lt.s32.totalorder %s64, 0
    %s66 = scalar_select %p65, %s64, 0
    %s67 = smul.addr %s66, 8
    %s68 = scalar_lea.vmem %s0, %s67
    %s69 = sadd.s32 0, 0
    %p70 = scmp.lt.s32.totalorder %s69, 0
    %s71 = scalar_select %p70, %s69, 0
    %s72 = sadd.s32 0, 0
    %p73 = scmp.lt.s32.totalorder %s72, 0
    %s74 = scalar_select %p73, %s72, 0
    %p75 = scmp.lt.s32.totalorder %s74, 0
    %s76 = scalar_select %p75, %s74, 0
    %s77 = scalar_lea.vmem %s1, %s76
    %s78 = sadd.s32 0, 0
    %p79 = scmp.lt.s32.totalorder %s78, 0
    %s80 = scalar_select %p79, %s78, 0
    %s81 = sadd.s32 0, 0
    %p82 = scmp.lt.s32.totalorder %s81, 0
    %s83 = scalar_select %p82, %s81, 0
    %p84 = scmp.lt.s32.totalorder %s83, 0
    %s85 = scalar_select %p84, %s83, 0
    %s86 = scalar_lea.vmem %s2, %s85
    %s87 = sadd.s32 0, 0
    %p88 = scmp.lt.s32.totalorder %s87, 0
    %s89 = scalar_select %p88, %s87, 0
    %s90 = sadd.s32 0, 0
    %s91 = smul.u32 %s90, 16
    %p92 = scmp.eq.s32.totalorder 0, 0
    // Predicated region
    $region14: #{tpu_custom_call.1} parent=1 // pred_check
      %p93 = pneg %p92
    $region15: #{tpu_custom_call.1} parent=1 // pred_check_branch
      %95 = sbr.rel (%p93) target = $region17
    $region16: #{tpu_custom_call.1} parent=1 // pred_region
      %vm96 = vcmask 122880
      %97 = vst.msk [vmem:[#allocation2] sm:$0x1] %vm96, 0.0
      %98 = vst.msk [vmem:[#allocation3] sm:$0x1] %vm96, 0.0
      %99 = vst.msk [vmem:[#allocation4] sm:$0x1] %vm96, 0.0
    $region17: #{tpu_custom_call.1} parent=1 // pred_fallthru
      _
    %p100 = scmp.lt.s32.totalorder %s91, 16
    // Predicated region
    $region18: #{tpu_custom_call.1} parent=1 // pred_check
      %p101 = pneg %p100
    $region19: #{tpu_custom_call.1} parent=1 // pred_check_branch
      %103 = sbr.rel (%p101) target = $region21
    $region20: #{tpu_custom_call.1} parent=1 // pred_region
      %v104 = vld [vmem:[%s68] sm:$0xff]
      %v105 = vld [vmem:[%s68 + $0x8] sm:$0xff]
      %v106 = vld [vmem:[%s68 + $0x10] sm:$0xff]
      %v107 = vld [vmem:[%s68 + $0x18] sm:$0xff]
      %v108 = vld [vmem:[%s68 + $0x20] sm:$0x7]
      %v109 = vld [vmem:[%s77] sm:$0x1]
      %v110 = vld [vmem:[%s86] sm:$0x1]
      %v111 = vlaneseq
      %v112 = vand.u32 %v111, 127
      %v113 = vstv %s91
      %v114 = vadd.s32 %v113, %v112
      %vm115 = vcmp.lt.s32.totalorder %v114, 16
      %v116 = vlaneseq
      %v117 = vshrl.u32 %v116, 7
      %v118 = vadd.s32 %v117, 8
      %v119 = vadd.s32 %v117, 16
      %v120 = vadd.s32 %v117, 24
      %v121 = vadd.s32 %v117, 32
      %v122 = vlaneseq
      %v123 = vshrl.u32 %v122, 7
      %v124 = vsub.s32 0, %v123
      %v125 = vrot.slane %v109, %v124
      %vm126 = vcmp.eq.s32.totalorder %v117, %v125
      %vm127 = vcmp.eq.s32.totalorder %v118, %v125
      %vm128 = vcmp.eq.s32.totalorder %v119, %v125
      %vm129 = vcmp.eq.s32.totalorder %v120, %v125
      %vm130 = vcmp.eq.s32.totalorder %v121, %v125
      %vm131 = vcmask 130048
      %v132 = vsel %vm131, %v104, -inf
      %v133 = vsel %vm131, %v105, -inf
      %v134 = vsel %vm131, %v106, -inf
      %v135 = vsel %vm131, %v107, -inf
      %vm136 = vcmask 124928
      %v137 = vsel %vm136, %v108, -inf
      %v138 = vmax.f32 %v132, %v137
      %v139 = vmax.f32 %v138, %v133
      %v140 = vmax.f32 %v134, %v135
      %v141 = vmax.f32 %v139, %v140
      %v142 = vrot.slane %v141, 4
      %v143 = vmax.f32 %v141, %v142
      %v144 = vrot.slane %v143, 2
      %v145 = vmax.f32 %v143, %v144
      %v146 = vrot.slane %v145, 1
      %v147 = vmax.f32 %v145, %v146
      %v148 = vsub.f32 %v104, %v147
      %v149 = vsub.f32 %v105, %v147
      %v150 = vsub.f32 %v106, %v147
      %v151 = vsub.f32 %v107, %v147
      %v152 = vsub.f32 %v108, %v147
      %v153 = vmul.f32 %v148, 1.442695
      %v154 = vpow.pop %v153
      %v155 = vmul.f32 %v149, 1.442695
      %v156 = vpow.pop %v155
      %v157 = vmul.f32 %v150, 1.442695
      %v158 = vpow.pop %v157
      %v159 = vmul.f32 %v151, 1.442695
      %v160 = vpow.pop %v159
      %v161 = vmul.f32 %v152, 1.442695
      %v162 = vpow.pop %v161
      %v163 = vsel %vm131, %v154, 0.0
      %v164 = vsel %vm131, %v156, 0.0
      %v165 = vadd.f32 %v163, %v164
      %v166 = vsel %vm131, %v158, 0.0
      %v167 = vadd.f32 %v165, %v166
      %v168 = vsel %vm131, %v160, 0.0
      %v169 = vadd.f32 %v167, %v168
      %v170 = vsel %vm136, %v162, 0.0
      %v171 = vadd.f32 %v169, %v170
      %v172 = vrot.slane %v171, 4
      %v173 = vadd.f32 %v171, %v172
      %v174 = vrot.slane %v173, 2
      %v175 = vadd.f32 %v173, %v174
      %v176 = vrot.slane %v175, 1
      %v177 = vadd.f32 %v175, %v176
      %v178 = vrcp.pop %v177
      %v179 = vmul.f32 1.0, %v178
      %v180 = vlog2.pop %v177
      %v181 = vmul.f32 %v180, 0.6931472
      %v182 = vsel %vm126, %v148, 0.0
      %v183 = vsel %vm127, %v149, 0.0
      %v184 = vsel %vm128, %v150, 0.0
      %v185 = vsel %vm129, %v151, 0.0
      %v186 = vsel %vm130, %v152, 0.0
      %v187 = vsel %vm131, %v182, 0.0
      %v188 = vsel %vm131, %v183, 0.0
      %v189 = vadd.f32 %v187, %v188
      %v190 = vsel %vm131, %v184, 0.0
      %v191 = vadd.f32 %v189, %v190
      %v192 = vsel %vm131, %v185, 0.0
      %v193 = vadd.f32 %v191, %v192
      %v194 = vsel %vm136, %v186, 0.0
      %v195 = vadd.f32 %v193, %v194
      %v196 = vrot.slane %v195, 4
      %v197 = vadd.f32 %v195, %v196
      %v198 = vrot.slane %v197, 2
      %v199 = vadd.f32 %v197, %v198
      %v200 = vrot.slane %v199, 1
      %v201 = vadd.f32 %v199, %v200
      %v202 = vsub.f32 %v201, %v181
      %v203 = vld [vmem:[#allocation2] sm:$0x1]
      %v204 = vmul.f32 %v202, %v110
      %v205 = vsel %vm115, %v204, 0.0
      %v206 = vadd.f32 %v203, %v205
      %vm207 = vcmask 122880
      %208 = vst.msk [vmem:[#allocation2] sm:$0x1] %vm207, %v206
      %v209 = vld [vmem:[#allocation4] sm:$0x1]
      %v210 = vsel %vm115, %v110, 0.0
      %v211 = vadd.f32 %v209, %v210
      %212 = vst.msk [vmem:[#allocation4] sm:$0x1] %vm207, %v211
      %v213 = vmul.f32 %v154, %v179
      %v214 = vmul.f32 %v156, %v179
      %v215 = vmul.f32 %v158, %v179
      %v216 = vmul.f32 %v160, %v179
      %v217 = vmul.f32 %v162, %v179
      %v218 = vmax.f32 %v213, 1e-07
      %v219 = vmax.f32 %v214, 1e-07
      %v220 = vmax.f32 %v215, 1e-07
      %v221 = vmax.f32 %v216, 1e-07
      %v222 = vmax.f32 %v217, 1e-07
      %v223 = vmin.f32 %v218, 1.0
      %v224 = vmin.f32 %v219, 1.0
      %v225 = vmin.f32 %v220, 1.0
      %v226 = vmin.f32 %v221, 1.0
      %v227 = vmin.f32 %v222, 1.0
      %v228 = vmul.f32 %v223, 0.5
      %v229 = vmul.f32 %v224, 0.5
      %v230 = vmul.f32 %v225, 0.5
      %v231 = vmul.f32 %v226, 0.5
      %v232 = vmul.f32 %v227, 0.5
      %v233 = vsel %vm126, 0.5, 5e-05
      %v234 = vsel %vm127, 0.5, 5e-05
      %v235 = vsel %vm128, 0.5, 5e-05
      %v236 = vsel %vm129, 0.5, 5e-05
      %v237 = vsel %vm130, 0.5, 5e-05
      %v238 = vadd.f32 %v228, %v233
      %v239 = vadd.f32 %v229, %v234
      %v240 = vadd.f32 %v230, %v235
      %v241 = vadd.f32 %v231, %v236
      %v242 = vadd.f32 %v232, %v237
      %v243 = vlog2.pop %v238
      %v244 = vmul.f32 %v243, 0.6931472
      %v245 = vlog2.pop %v239
      %v246 = vmul.f32 %v245, 0.6931472
      %v247 = vlog2.pop %v240
      %v248 = vmul.f32 %v247, 0.6931472
      %v249 = vlog2.pop %v241
      %v250 = vmul.f32 %v249, 0.6931472
      %v251 = vlog2.pop %v242
      %v252 = vmul.f32 %v251, 0.6931472
      %v253 = vmul.f32 %v223, %v244
      %v254 = vmul.f32 %v224, %v246
      %v255 = vmul.f32 %v225, %v248
      %v256 = vmul.f32 %v226, %v250
      %v257 = vmul.f32 %v227, %v252
      %v258 = vsel %vm131, %v253, 0.0
      %v259 = vsel %vm131, %v254, 0.0
      %v260 = vadd.f32 %v258, %v259
      %v261 = vsel %vm131, %v255, 0.0
      %v262 = vadd.f32 %v260, %v261
      %v263 = vsel %vm131, %v256, 0.0
      %v264 = vadd.f32 %v262, %v263
      %v265 = vsel %vm136, %v257, 0.0
      %v266 = vadd.f32 %v264, %v265
      %v267 = vrot.slane %v266, 4
      %v268 = vadd.f32 %v266, %v267
      %v269 = vrot.slane %v268, 2
      %v270 = vadd.f32 %v268, %v269
      %v271 = vrot.slane %v270, 1
      %v272 = vadd.f32 %v270, %v271
      %v273 = vld [vmem:[#allocation3] sm:$0x1]
      %v274 = vsel %vm115, %v272, 0.0
      %v275 = vadd.f32 %v273, %v274
      %276 = vst.msk [vmem:[#allocation3] sm:$0x1] %vm207, %v275
    $region21: #{tpu_custom_call.1} parent=1 // pred_fallthru
      _
    // Predicated region
    $region22: #{tpu_custom_call.1} parent=1 // pred_check
      %p277 = pneg %p92
    $region23: #{tpu_custom_call.1} parent=1 // pred_check_branch
      %279 = sbr.rel (%p277) target = $region25
    $region24: #{tpu_custom_call.1} parent=1 // pred_region
      %v280 = vld [vmem:[#allocation2] sm:$0x1]
      %vm281 = vcmask 122880
      %v282 = vsel %vm281, %v280, 0.0
      %283 = vadd.xlane.f32.xlu0 %v282
      %v284 = vpop.xlane.xlu0 %283
      %v285 = vrot.slane %v284, 4
      %v286 = vadd.f32 %v284, %v285
      %v287 = vrot.slane %v286, 2
      %v288 = vadd.f32 %v286, %v287
      %v289 = vrot.slane %v288, 1
      %v290 = vadd.f32 %v288, %v289
      %s291 = vtos %v290
      %s292 = ssub.f32 0.0, %s291
      %v293 = vld [vmem:[#allocation4] sm:$0x1]
      %v294 = vsel %vm281, %v293, 0.0
      %295 = vadd.xlane.f32.xlu0 %v294
      %v296 = vpop.xlane.xlu0 %295
      %v297 = vrot.slane %v296, 4
      %v298 = vadd.f32 %v296, %v297
      %v299 = vrot.slane %v298, 2
      %v300 = vadd.f32 %v298, %v299
      %v301 = vrot.slane %v300, 1
      %v302 = vadd.f32 %v300, %v301
      %s303 = vtos %v302
      %v304 = vld [vmem:[#allocation3] sm:$0x1]
      %v305 = vsel %vm281, %v304, 0.0
      %306 = vadd.xlane.f32.xlu0 %v305
      %v307 = vpop.xlane.xlu0 %306
      %v308 = vrot.slane %v307, 4
      %v309 = vadd.f32 %v307, %v308
      %v310 = vrot.slane %v309, 2
      %v311 = vadd.f32 %v309, %v310
      %v312 = vrot.slane %v311, 1
      %v313 = vadd.f32 %v311, %v312
      %s314 = vtos %v313
      %s315 = ssub.f32 0.0, %s314
      %v316 = vlaneseq
      %v317 = vand.u32 %v316, 127
      %vm318 = vcmp.eq.s32.totalorder %v317, 0
      %vm319 = vcmp.eq.s32.totalorder %v317, 1
      %vm320 = vcmp.eq.s32.totalorder %v317, 2
      %v321 = vstv %s315
      %v322 = vsel %vm320, %v321, 0.0
      %v323 = vstv %s303
      %v324 = vsel %vm319, %v323, %v322
      %v325 = vstv %s292
      %v326 = vsel %vm318, %v325, %v324
      %327 = vst [vmem:[#allocation5] sm:$0xff] %v326
    $region25: #{tpu_custom_call.1} parent=1 // pred_fallthru
      _
    // Predicated region
    $region26: #{tpu_custom_call.1} parent=1 // pred_check
      _
    $region27: #{tpu_custom_call.1} parent=1 // pred_check_branch
      %329 = sbr.rel (0) target = $region29
    $region28: #{tpu_custom_call.1} parent=1 // pred_region
      %s331 = ssub.s32 128, 128
      %332 = vsyncadd [#allocation6], %s331
      %s334 = sshll.u32 [#allocation5], 4
      %s335 = int_to_ptr.vmem [resolvable:$true] %s334
      %337 = dma.vmem_to_hbm [thread:$0]  %s335, 128, %s3, [#allocation6]
    $region29: #{tpu_custom_call.1} parent=1 // pred_fallthru
      _
    // Predicated region
    $region30: #{tpu_custom_call.1} parent=1 // pred_check
      _
    $region31: #{tpu_custom_call.1} parent=1 // pred_check_branch
      %339 = sbr.rel (0) target = $region33
    $region32: #{tpu_custom_call.1} parent=1 // pred_region
      %340 = dma.done [#allocation6], 128
    $region33: #{tpu_custom_call.1} parent=1 // pred_fallthru
      _
    %341 = vsyncpa [#allocation6], 1

</llo_original>
